<compile_context>
chip_gen: v5e
topology: v5e:2x2
jax: 0.10.0
libtpu: 0.0.40
codegen_flags: <defaults>
</compile_context>

<pallas_src>
import functools

import numpy as np
import jax
import jax.numpy as jnp
from jax import lax
from jax.experimental import pallas as pl
from jax.experimental.pallas import tpu as pltpu


_SMALL_BAND = 1024  # use the tiny band-matmul finalize when r*C <= this (<= 4 MiB f32)


# ---------------------------------------------------------------------------
# shared finalize: folded channel sums -> folded attention vector
# ---------------------------------------------------------------------------
def _attention_from_sum(s_f, w_ref, *, n_total, c, r, k):
    """s_f: (1, r*C) folded channel sums.  Returns (1, r*C) folded attention
    relu(conv1d_k(mean)) replicated r times (matching the folded x layout)."""
    ct = r * c
    pad = (k - 1) // 2
    mean_f = s_f * jnp.float32(1.0 / n_total)                     # (1, ct)

    if ct <= _SMALL_BAND:
        # One tiny (ct, ct) band matmul performs the r-group fold, the k-tap conv
        # and the r-fold tiling in a single op.  Runs exactly once per call, so the
        # under-utilized M=1 MXU op is irrelevant; the matrix is <= 4 MiB.
        row = lax.broadcasted_iota(jnp.int32, (ct, ct), 0)
        col = lax.broadcasted_iota(jnp.int32, (ct, ct), 1)
        if r > 1:
            # folding only happens when C divides 128, i.e. C is a power of two
            row = row & (c - 1)
            col = col & (c - 1)
        diff = row - col + pad                                    # band = w[(a%C)-(b%C)+pad]
        band = jnp.zeros((ct, ct), jnp.float32)
        for j in range(k):                                        # k is tiny & static
            band = jnp.where(diff == j, w_ref[j], band)
        y = lax.dot_general(mean_f, band, (((1,), (0,)), ((), ())),
                            precision=lax.Precision.HIGHEST,
                            preferred_element_type=jnp.float32)   # (1, ct)
    else:
        # Large C (r == 1 here, since folding implies ct == 128): k masked
        # shifted-accumulates.  O(k*C) work, no (C, C) buffer, no MXU; the static
        # lane shifts ride the cross-lane unit (equivalent to pltpu.roll here).
        y = jnp.zeros_like(mean_f)
        col = lax.broadcasted_iota(jnp.int32, mean_f.shape, 1)
        for j in range(k):
            off = j - pad                                         # want mean[i + off]
            sh = jnp.roll(mean_f, -off, axis=-1) if off else mean_f
            valid = (col >= -off) & (col < ct - off)              # zero padding at edges
            y = y + jnp.where(valid, sh, 0.0) * w_ref[j]
    return jnp.maximum(y, 0.0)                                    # forward applies relu


# ---------------------------------------------------------------------------
# kernels
# ---------------------------------------------------------------------------
def _eca_fused_kernel(w_ref, x_ref, o_ref, *, n_total, c, r, k):
    """Fused path: x resident in VMEM -> sum, conv, relu, scale in one kernel."""
    s_f = jnp.sum(x_ref[...].astype(jnp.float32), axis=0, keepdims=True)   # (1, r*C)
    y_f = _attention_from_sum(s_f, w_ref, n_total=n_total, c=c, r=r, k=k)
    o_ref[...] = (x_ref[...].astype(jnp.float32) * y_f).astype(o_ref.dtype)


def _eca_reduce_kernel(w_ref, x_ref, y_ref, *, n_total, c, r, k, tn, n_rows, mask_tail):
    """Streaming pass 1: accumulate folded channel sums (f32) in a resident block;
    on the last step turn them into the folded attention vector."""
    i = pl.program_id(0)

    @pl.when(i == 0)
    def _init():
        y_ref[...] = jnp.zeros_like(y_ref)

    xs = x_ref[...].astype(jnp.float32)            # accumulate in f32, stream native dtype
    if mask_tail:                                  # cdiv grid: zero the overrun tail rows
        rows = lax.broadcasted_iota(jnp.int32, xs.shape, 0) + i * tn
        xs = jnp.where(rows < n_rows, xs, 0.0)
    y_ref[...] += jnp.sum(xs, axis=0, keepdims=True)

    @pl.when(i == pl.num_programs(0) - 1)
    def _finalize():
        y_ref[...] = _attention_from_sum(y_ref[...], w_ref,
                                         n_total=n_total, c=c, r=r, k=k)


def _eca_scale_kernel(x_ref, y_ref, o_ref):
    """Streaming pass 2: out = x * y (y already in the folded layout)."""
    o_ref[...] = (x_ref[...].astype(jnp.float32) * y_ref[...]).astype(o_ref.dtype)


# ---------------------------------------------------------------------------
# wrapper
# ---------------------------------------------------------------------------
def _vmem_capacity_bytes():
    try:
        cap = int(pltpu.get_tpu_info().vmem_capacity_bytes)
        if cap > 0:
            return cap
    except Exception:
        pass
    return 64 * 1024 * 1024          # conservative (v7x-sized) fallback


def _pick_rows(n_rows, row_bytes, vmem_limit):
    """Rows per streamed tile from a VMEM byte budget (double-buffered in/out)."""
    budget = max(vmem_limit // 6, 1 << 20)
    tn = min(budget // max(row_bytes, 1), 2048, n_rows)
    if tn >= n_rows:
        return n_rows                # block == full dim is always legal
    return max(8, (tn // 8) * 8)     # keep the sublane dim a multiple of 8


def eca_forward(x, conv_weight):
    """ECALayer forward.  x: (N, C); conv_weight: Conv1d(1,1,k) taps, shape (k,)."""
    N, C = x.shape
    w = conv_weight.astype(jnp.float32).reshape(-1)
    k = int(w.shape[0])
    out_dtype = x.dtype
    itemsize = jnp.dtype(x.dtype).itemsize

    # lane folding: (N, C) -> (N/r, r*C) with r*C == 128 (free row-major regroup)
    if C < 128 and 128 % C == 0 and N % (128 // C) == 0:
        r = 128 // C
    else:
        r = 1
    ct, nf = r * C, N // r
    x_f = x.reshape(nf, ct) if r > 1 else x

    vmem_cap = _vmem_capacity_bytes()
    vmem_limit = min(64 * 1024 * 1024, int(vmem_cap * 0.7))   # 64 MiB v5e/v6e, ~45 MiB v7x

    # ---- fused single-call path: one HBM read + one write of x ------------
    x_bytes = N * C * itemsize
    band_bytes = (ct * ct * 4) if ct <= _SMALL_BAND else 0
    working_set = 2 * x_bytes + N * C * 4 + band_bytes        # in + out + f32 temp + band
    if working_set <= vmem_cap // 3:
        out_f = pl.pallas_call(
            functools.partial(_eca_fused_kernel, n_total=N, c=C, r=r, k=k),
            out_shape=jax.ShapeDtypeStruct((nf, ct), out_dtype),
            in_specs=[pl.BlockSpec(memory_space=pltpu.MemorySpace.SMEM),   # conv taps
                      pl.BlockSpec(memory_space=pltpu.MemorySpace.VMEM)],  # whole x in VMEM
            out_specs=pl.BlockSpec(memory_space=pltpu.MemorySpace.VMEM),
            compiler_params=pltpu.CompilerParams(vmem_limit_bytes=vmem_limit),
        )(w, x_f)
        return out_f.reshape(N, C) if r > 1 else out_f

    # ---- streaming two-pass path (x larger than the VMEM budget) ----------
    row_bytes = ct * itemsize
    tn1 = _pick_rows(nf, row_bytes, vmem_limit)
    g1 = pl.cdiv(nf, tn1)
    y_f = pl.pallas_call(
        functools.partial(_eca_reduce_kernel, n_total=N, c=C, r=r, k=k,
                          tn=tn1, n_rows=nf, mask_tail=(nf % tn1 != 0)),
        out_shape=jax.ShapeDtypeStruct((1, ct), jnp.float32),
        grid=(g1,),
        in_specs=[pl.BlockSpec(memory_space=pltpu.MemorySpace.SMEM),
                  pl.BlockSpec((tn1, ct), lambda i: (i, 0))],
        out_specs=pl.BlockSpec((1, ct), lambda i: (0, 0)),    # VMEM-resident accumulator
        compiler_params=pltpu.CompilerParams(
            dimension_semantics=("arbitrary",),
            vmem_limit_bytes=vmem_limit),
    )(w, x_f)
    # (v7x note: the reduction runs on one TensorCore; a leading "parallel" core
    #  axis with per-core partial sums would use both TCs for this pass.)

    tn2 = _pick_rows(nf, 2 * row_bytes, vmem_limit)           # in + out both streamed
    g2 = pl.cdiv(nf, tn2)
    out_f = pl.pallas_call(
        _eca_scale_kernel,
        out_shape=jax.ShapeDtypeStruct((nf, ct), out_dtype),
        grid=(g2,),
        in_specs=[pl.BlockSpec((tn2, ct), lambda i: (i, 0)),
                  pl.BlockSpec((1, ct), lambda i: (0, 0))],
        out_specs=pl.BlockSpec((tn2, ct), lambda i: (i, 0)),  # lane-dense stores
        compiler_params=pltpu.CompilerParams(
            dimension_semantics=("parallel",),
            vmem_limit_bytes=vmem_limit),
    )(x_f, y_f)
    return out_f.reshape(N, C) if r > 1 else out_f


# ---------------------------------------------------------------------------
# demo + reference check
# ---------------------------------------------------------------------------
def _reference(x, w, k):
    """Numpy replica of the PyTorch ECALayer forward."""
    x = np.asarray(x, np.float32)
    w = np.asarray(w, np.float32)
    C = x.shape[1]
    m = x.mean(axis=0)
    pad = (k - 1) // 2
    mp = np.pad(m, (pad, pad))
    y = np.array([float(np.dot(w, mp[i:i + k])) for i in range(C)], np.float32)
    y = np.maximum(y, 0.0)
    return x * y[None, :]


if __name__ == "__main__":
    # x: (N points, C channels) as the forward implies (mean over dim 0, x * y broadcast)
    N, C = 256, 32
    gamma, b = 2, 1
    t = int(abs((np.log2(C) + b) / gamma))
    k_size = t if t % 2 else t + 1          # C=32 -> k=3 (same formula as the module)

    kx, kw = jax.random.split(jax.random.PRNGKey(0))
    x = jax.random.normal(kx, (N, C), dtype=jnp.float32)
    conv_w = jax.random.normal(kw, (k_size,), dtype=jnp.float32) * 0.5  # Conv1d(1,1,k) taps

    out = jax.block_until_ready(eca_forward(x, conv_w))

    ref = _reference(np.array(x), np.array(conv_w), k_size)
    np.testing.assert_allclose(np.asarray(out), ref, atol=1e-4, rtol=1e-4)

    print("KERNEL_OK")
</pallas_src>

<mosaic_0001>
module attributes {stable_mosaic.version = 11 : i64} {
  func.func @_eca_fused_kernel(%arg0: memref<3xf32, #tpu.memory_space<smem>>, %arg1: memref<64x128xf32, #tpu.memory_space<vmem>>, %arg2: memref<64x128xf32, #tpu.memory_space<vmem>>) attributes {dimension_semantics = [], scalar_prefetch = 0 : i64, scratch_operands = 0 : i64, tpu.core_type = #tpu.core_type<tc>} {
    %c0 = arith.constant 0 : index
    %c0_0 = arith.constant 0 : index
    %0 = vector.load %arg1[%c0, %c0_0] : memref<64x128xf32, #tpu.memory_space<vmem>>, vector<64x128xf32>
    %cst = arith.constant dense<0.000000e+00> : vector<128xf32>
    %1 = vector.multi_reduction <add>, %0, %cst [0] : vector<64x128xf32> to vector<128xf32>
    %2 = vector.shape_cast %1 : vector<128xf32> to vector<1x128xf32>
    %cst_1 = arith.constant 3.906250e-03 : f32
    %3 = vector.broadcast %cst_1 : f32 to vector<1x128xf32>
    %4 = arith.mulf %2, %3 : vector<1x128xf32>
    %5 = tpu.iota {dimensions = array<i32: 0>} : vector<128x128xi32>
    %6 = tpu.iota {dimensions = array<i32: 1>} : vector<128x128xi32>
    %c31_i32 = arith.constant 31 : i32
    %7 = vector.broadcast %c31_i32 : i32 to vector<128x128xi32>
    %8 = arith.andi %5, %7 : vector<128x128xi32>
    %c31_i32_2 = arith.constant 31 : i32
    %9 = vector.broadcast %c31_i32_2 : i32 to vector<128x128xi32>
    %10 = arith.andi %6, %9 : vector<128x128xi32>
    %11 = arith.subi %8, %10 : vector<128x128xi32>
    %c1_i32 = arith.constant 1 : i32
    %12 = vector.broadcast %c1_i32 : i32 to vector<128x128xi32>
    %13 = arith.addi %11, %12 : vector<128x128xi32>
    %cst_3 = arith.constant 0.000000e+00 : f32
    %14 = vector.broadcast %cst_3 : f32 to vector<128x128xf32>
    %c0_i32 = arith.constant 0 : i32
    %15 = vector.broadcast %c0_i32 : i32 to vector<128x128xi32>
    %16 = arith.cmpi eq, %13, %15 : vector<128x128xi32>
    %c0_4 = arith.constant 0 : index
    %17 = memref.load %arg0[%c0_4] : memref<3xf32, #tpu.memory_space<smem>>
    %18 = vector.broadcast %17 : f32 to vector<128x128xf32>
    %19 = arith.select %16, %18, %14 : vector<128x128xi1>, vector<128x128xf32>
    %c1_i32_5 = arith.constant 1 : i32
    %20 = vector.broadcast %c1_i32_5 : i32 to vector<128x128xi32>
    %21 = arith.cmpi eq, %13, %20 : vector<128x128xi32>
    %c1 = arith.constant 1 : index
    %22 = memref.load %arg0[%c1] : memref<3xf32, #tpu.memory_space<smem>>
    %23 = vector.broadcast %22 : f32 to vector<128x128xf32>
    %24 = arith.select %21, %23, %19 : vector<128x128xi1>, vector<128x128xf32>
    %c2_i32 = arith.constant 2 : i32
    %25 = vector.broadcast %c2_i32 : i32 to vector<128x128xi32>
    %26 = arith.cmpi eq, %13, %25 : vector<128x128xi32>
    %c2 = arith.constant 2 : index
    %27 = memref.load %arg0[%c2] : memref<3xf32, #tpu.memory_space<smem>>
    %28 = vector.broadcast %27 : f32 to vector<128x128xf32>
    %29 = arith.select %26, %28, %24 : vector<128x128xi1>, vector<128x128xf32>
    %cst_6 = arith.constant dense<0.000000e+00> : vector<1x128xf32>
    %30 = tpu.matmul %4, %29, %cst_6 {dimension_numbers = #tpu.dot_dimension_numbers<[1], [0], [0], [1], [0, 0, 1, 1], [], []>, precision = #tpu.contract_precision<fp32>} : vector<1x128xf32>, vector<128x128xf32>, vector<1x128xf32> -> vector<1x128xf32>
    %cst_7 = arith.constant 0.000000e+00 : f32
    %31 = vector.broadcast %cst_7 : f32 to vector<1x128xf32>
    %32 = arith.maximumf %30, %31 : vector<1x128xf32>
    %c0_8 = arith.constant 0 : index
    %c0_9 = arith.constant 0 : index
    %33 = vector.load %arg1[%c0_8, %c0_9] : memref<64x128xf32, #tpu.memory_space<vmem>>, vector<64x128xf32>
    %34 = vector.broadcast %32 : vector<1x128xf32> to vector<64x128xf32>
    %35 = arith.mulf %33, %34 : vector<64x128xf32>
    %c0_10 = arith.constant 0 : index
    %c0_11 = arith.constant 0 : index
    %36 = vector.load %arg2[%c0_10, %c0_11] : memref<64x128xf32, #tpu.memory_space<vmem>>, vector<64x128xf32>
    tpu.vector_store %arg2[%c0_10, %c0_11], %35 {strides = array<i32>} : memref<64x128xf32, #tpu.memory_space<vmem>>, vector<64x128xf32>,
    return
  }
}

</mosaic_0001>

<llo_original>
// kernel: tpu_custom_call.1
$region0: #{tpu_custom_call.1}
  #allocation0 [shape = 'u32[]', space=smem, size = 0x4, offset = 0x4, fixed_abs, tag = 'smem constant byte address 0x4 - core index']
  #allocation1 [shape = 'u32[72,128]{1,0:T(1,128)}', space=vmem, size = 0x9000, scoped, tag = 'internal scratch']
  %s0 = inlined_call_operand.hbm [shape: f32[3], index: 0, kind: input, shape index: {}]
  %s1 = inlined_call_operand.hbm [shape: f32[64,128], index: 1, kind: input, shape index: {}]
  %s2 = inlined_call_operand.hbm [shape: f32[64,128], index: 2, kind: output, shape index: {}]
  %s3 = sld [smem:[#allocation0]]
  $region26: #{tpu_custom_call.1} parent=0
    _
  %s5 = ssub.s32 1, %s3
  %s6 = scalar_select 0, %s5, %s3
  $region1: #{tpu_custom_call.1} parent=0
    #allocation2 [shape = 'u8[512]{0}', space=smem, size = 0x200, scoped, tag = 'input window, operand 0, single buffered']
    #allocation3 [shape = 's32[1]{0}', space=sflag, size = 0x4, scoped, tag = 'scoped memory for tpu_custom_call.1']
    #allocation4 [shape = 's32[1]{0}', space=sflag, size = 0x4, scoped, tag = 'scoped memory for tpu_custom_call.1']
    #allocation5 [shape = 's32[1]{0}', space=sflag, size = 0x4, scoped, tag = 'scoped memory for tpu_custom_call.1']
    #allocation6 [shape = 'u8[32768]{0}', space=vmem, size = 0x8000, scoped, tag = 'input window, operand 1, single buffered']
    #allocation7 [shape = 'u8[32768]{0}', space=vmem, size = 0x8000, scoped, tag = 'output window, operand 0, single buffered']
    %7 = vsyncpa [#allocation5], 0
    %8 = vsyncpa [#allocation3], 0
    %9 = vsyncpa [#allocation4], 0
    // Predicated region
    $region2: #{tpu_custom_call.1} parent=1 // pred_check
      _
    $region3: #{tpu_custom_call.1} parent=1 // pred_check_branch
      %11 = sbr.rel (0) target = $region5
    $region4: #{tpu_custom_call.1} parent=1 // pred_region
      %13 = vsyncadd [#allocation5], 0
      %s15 = sshll.u32 %s0, 4
      %s16 = int_to_ptr.hbm [resolvable:$true] %s15
      %18 = dma.hbm_to_smem %s16, 16, [#allocation2], [#allocation5]
    $region5: #{tpu_custom_call.1} parent=1 // pred_fallthru
      _
    // Predicated region
    $region6: #{tpu_custom_call.1} parent=1 // pred_check
      _
    $region7: #{tpu_custom_call.1} parent=1 // pred_check_branch
      %20 = sbr.rel (0) target = $region9
    $region8: #{tpu_custom_call.1} parent=1 // pred_region
      %22 = vsyncadd [#allocation3], 0
      %s23 = sshll.u32 %s1, 4
      %s24 = int_to_ptr.hbm [resolvable:$true] %s23
      %s25 = sshll.u32 [#allocation6], 4
      %s26 = int_to_ptr.vmem [resolvable:$true] %s25
      %31 = dma.hbm_to_vmem [thread:$0]  %s24, 1024, %s26, [#allocation3], 128, 128, 8
    $region9: #{tpu_custom_call.1} parent=1 // pred_fallthru
      _
    // Predicated region
    $region10: #{tpu_custom_call.1} parent=1 // pred_check
      _
    $region11: #{tpu_custom_call.1} parent=1 // pred_check_branch
      %33 = sbr.rel (0) target = $region13
    $region12: #{tpu_custom_call.1} parent=1 // pred_region
      %35 = dma.done [#allocation5], 16
    $region13: #{tpu_custom_call.1} parent=1 // pred_fallthru
      _
    // Predicated region
    $region14: #{tpu_custom_call.1} parent=1 // pred_check
      _
    $region15: #{tpu_custom_call.1} parent=1 // pred_check_branch
      %37 = sbr.rel (0) target = $region17
    $region16: #{tpu_custom_call.1} parent=1 // pred_region
      %39 = dma.done [#allocation3], 1024
    $region17: #{tpu_custom_call.1} parent=1 // pred_fallthru
      _
    %40 = sfence
    %v41 = vld [vmem:[#allocation6] sm:$0xff]
    %v42 = vld [vmem:[#allocation6 + $0x8] sm:$0xff]
    %v43 = vld [vmem:[#allocation6 + $0x10] sm:$0xff]
    %v44 = vld [vmem:[#allocation6 + $0x18] sm:$0xff]
    %v45 = vld [vmem:[#allocation6 + $0x20] sm:$0xff]
    %v46 = vld [vmem:[#allocation6 + $0x28] sm:$0xff]
    %v47 = vld [vmem:[#allocation6 + $0x30] sm:$0xff]
    %v48 = vld [vmem:[#allocation6 + $0x38] sm:$0xff]
    %v49 = vadd.f32 %v41, %v42
    %v50 = vadd.f32 %v49, %v43
    %v51 = vadd.f32 %v50, %v44
    %v52 = vadd.f32 %v51, %v45
    %v53 = vadd.f32 %v52, %v46
    %v54 = vadd.f32 %v53, %v47
    %v55 = vadd.f32 %v54, %v48
    %v56 = vrot.slane %v55, 4
    %v57 = vadd.f32 %v55, %v56
    %v58 = vrot.slane %v57, 2
    %v59 = vadd.f32 %v57, %v58
    %v60 = vrot.slane %v59, 1
    %v61 = vadd.f32 %v59, %v60
    %v62 = vmul.f32 %v61, 0.00390625
    %v63 = vlaneseq
    %v64 = vshrl.u32 %v63, 7
    %v65 = vadd.s32 %v64, 8
    %v66 = vadd.s32 %v64, 16
    %v67 = vadd.s32 %v64, 24
    %v68 = vadd.s32 %v64, 32
    %v69 = vadd.s32 %v64, 40
    %v70 = vadd.s32 %v64, 48
    %v71 = vadd.s32 %v64, 56
    %v72 = vadd.s32 %v64, 64
    %v73 = vadd.s32 %v64, 72
    %v74 = vadd.s32 %v64, 80
    %v75 = vadd.s32 %v64, 88
    %v76 = vadd.s32 %v64, 96
    %v77 = vadd.s32 %v64, 104
    %v78 = vadd.s32 %v64, 112
    %v79 = vadd.s32 %v64, 120
    %v80 = vlaneseq
    %v81 = vand.u32 %v80, 127
    %v82 = vand.u32 %v64, 31
    %v83 = vand.u32 %v65, 31
    %v84 = vand.u32 %v66, 31
    %v85 = vand.u32 %v67, 31
    %v86 = vand.u32 %v68, 31
    %v87 = vand.u32 %v69, 31
    %v88 = vand.u32 %v70, 31
    %v89 = vand.u32 %v71, 31
    %v90 = vand.u32 %v72, 31
    %v91 = vand.u32 %v73, 31
    %v92 = vand.u32 %v74, 31
    %v93 = vand.u32 %v75, 31
    %v94 = vand.u32 %v76, 31
    %v95 = vand.u32 %v77, 31
    %v96 = vand.u32 %v78, 31
    %v97 = vand.u32 %v79, 31
    %v98 = vand.u32 %v81, 31
    %v99 = vsub.s32 %v82, %v98
    %v100 = vsub.s32 %v83, %v98
    %v101 = vsub.s32 %v84, %v98
    %v102 = vsub.s32 %v85, %v98
    %v103 = vsub.s32 %v86, %v98
    %v104 = vsub.s32 %v87, %v98
    %v105 = vsub.s32 %v88, %v98
    %v106 = vsub.s32 %v89, %v98
    %v107 = vsub.s32 %v90, %v98
    %v108 = vsub.s32 %v91, %v98
    %v109 = vsub.s32 %v92, %v98
    %v110 = vsub.s32 %v93, %v98
    %v111 = vsub.s32 %v94, %v98
    %v112 = vsub.s32 %v95, %v98
    %v113 = vsub.s32 %v96, %v98
    %v114 = vsub.s32 %v97, %v98
    %v115 = vadd.s32 %v99, 1
    %v116 = vadd.s32 %v100, 1
    %v117 = vadd.s32 %v101, 1
    %v118 = vadd.s32 %v102, 1
    %v119 = vadd.s32 %v103, 1
    %v120 = vadd.s32 %v104, 1
    %v121 = vadd.s32 %v105, 1
    %v122 = vadd.s32 %v106, 1
    %v123 = vadd.s32 %v107, 1
    %v124 = vadd.s32 %v108, 1
    %v125 = vadd.s32 %v109, 1
    %v126 = vadd.s32 %v110, 1
    %v127 = vadd.s32 %v111, 1
    %v128 = vadd.s32 %v112, 1
    %v129 = vadd.s32 %v113, 1
    %v130 = vadd.s32 %v114, 1
    %vm131 = vcmp.eq.s32.totalorder %v115, 0
    %vm132 = vcmp.eq.s32.totalorder %v116, 0
    %vm133 = vcmp.eq.s32.totalorder %v117, 0
    %vm134 = vcmp.eq.s32.totalorder %v118, 0
    %vm135 = vcmp.eq.s32.totalorder %v119, 0
    %vm136 = vcmp.eq.s32.totalorder %v120, 0
    %vm137 = vcmp.eq.s32.totalorder %v121, 0
    %vm138 = vcmp.eq.s32.totalorder %v122, 0
    %vm139 = vcmp.eq.s32.totalorder %v123, 0
    %vm140 = vcmp.eq.s32.totalorder %v124, 0
    %vm141 = vcmp.eq.s32.totalorder %v125, 0
    %vm142 = vcmp.eq.s32.totalorder %v126, 0
    %vm143 = vcmp.eq.s32.totalorder %v127, 0
    %vm144 = vcmp.eq.s32.totalorder %v128, 0
    %vm145 = vcmp.eq.s32.totalorder %v129, 0
    %vm146 = vcmp.eq.s32.totalorder %v130, 0
    %s147 = sld [smem:[#allocation2]]
    %v148 = vstv %s147
    %v149 = vsel %vm131, %v148, 0.0
    %v150 = vsel %vm132, %v148, 0.0
    %v151 = vsel %vm133, %v148, 0.0
    %v152 = vsel %vm134, %v148, 0.0
    %v153 = vsel %vm135, %v148, 0.0
    %v154 = vsel %vm136, %v148, 0.0
    %v155 = vsel %vm137, %v148, 0.0
    %v156 = vsel %vm138, %v148, 0.0
    %v157 = vsel %vm139, %v148, 0.0
    %v158 = vsel %vm140, %v148, 0.0
    %v159 = vsel %vm141, %v148, 0.0
    %v160 = vsel %vm142, %v148, 0.0
    %v161 = vsel %vm143, %v148, 0.0
    %v162 = vsel %vm144, %v148, 0.0
    %v163 = vsel %vm145, %v148, 0.0
    %v164 = vsel %vm146, %v148, 0.0
    %vm165 = vcmp.eq.s32.totalorder %v115, 1
    %vm166 = vcmp.eq.s32.totalorder %v116, 1
    %vm167 = vcmp.eq.s32.totalorder %v117, 1
    %vm168 = vcmp.eq.s32.totalorder %v118, 1
    %vm169 = vcmp.eq.s32.totalorder %v119, 1
    %vm170 = vcmp.eq.s32.totalorder %v120, 1
    %vm171 = vcmp.eq.s32.totalorder %v121, 1
    %vm172 = vcmp.eq.s32.totalorder %v122, 1
    %vm173 = vcmp.eq.s32.totalorder %v123, 1
    %vm174 = vcmp.eq.s32.totalorder %v124, 1
    %vm175 = vcmp.eq.s32.totalorder %v125, 1
    %vm176 = vcmp.eq.s32.totalorder %v126, 1
    %vm177 = vcmp.eq.s32.totalorder %v127, 1
    %vm178 = vcmp.eq.s32.totalorder %v128, 1
    %vm179 = vcmp.eq.s32.totalorder %v129, 1
    %vm180 = vcmp.eq.s32.totalorder %v130, 1
    %s181 = sld [smem:[#allocation2 + $0x1]]
    %v182 = vstv %s181
    %v183 = vsel %vm165, %v182, %v149
    %v184 = vsel %vm166, %v182, %v150
    %v185 = vsel %vm167, %v182, %v151
    %v186 = vsel %vm168, %v182, %v152
    %v187 = vsel %vm169, %v182, %v153
    %v188 = vsel %vm170, %v182, %v154
    %v189 = vsel %vm171, %v182, %v155
    %v190 = vsel %vm172, %v182, %v156
    %v191 = vsel %vm173, %v182, %v157
    %v192 = vsel %vm174, %v182, %v158
    %v193 = vsel %vm175, %v182, %v159
    %v194 = vsel %vm176, %v182, %v160
    %v195 = vsel %vm177, %v182, %v161
    %v196 = vsel %vm178, %v182, %v162
    %v197 = vsel %vm179, %v182, %v163
    %v198 = vsel %vm180, %v182, %v164
    %vm199 = vcmp.eq.s32.totalorder %v115, 2
    %vm200 = vcmp.eq.s32.totalorder %v116, 2
    %vm201 = vcmp.eq.s32.totalorder %v117, 2
    %vm202 = vcmp.eq.s32.totalorder %v118, 2
    %vm203 = vcmp.eq.s32.totalorder %v119, 2
    %vm204 = vcmp.eq.s32.totalorder %v120, 2
    %vm205 = vcmp.eq.s32.totalorder %v121, 2
    %vm206 = vcmp.eq.s32.totalorder %v122, 2
    %vm207 = vcmp.eq.s32.totalorder %v123, 2
    %vm208 = vcmp.eq.s32.totalorder %v124, 2
    %vm209 = vcmp.eq.s32.totalorder %v125, 2
    %vm210 = vcmp.eq.s32.totalorder %v126, 2
    %vm211 = vcmp.eq.s32.totalorder %v127, 2
    %vm212 = vcmp.eq.s32.totalorder %v128, 2
    %vm213 = vcmp.eq.s32.totalorder %v129, 2
    %vm214 = vcmp.eq.s32.totalorder %v130, 2
    %s215 = sld [smem:[#allocation2 + $0x2]]
    %v216 = vstv %s215
    %v217 = vsel %vm199, %v216, %v183
    %v218 = vsel %vm200, %v216, %v184
    %v219 = vsel %vm201, %v216, %v185
    %v220 = vsel %vm202, %v216, %v186
    %v221 = vsel %vm203, %v216, %v187
    %v222 = vsel %vm204, %v216, %v188
    %v223 = vsel %vm205, %v216, %v189
    %v224 = vsel %vm206, %v216, %v190
    %v225 = vsel %vm207, %v216, %v191
    %v226 = vsel %vm208, %v216, %v192
    %v227 = vsel %vm209, %v216, %v193
    %v228 = vsel %vm210, %v216, %v194
    %v229 = vsel %vm211, %v216, %v195
    %v230 = vsel %vm212, %v216, %v196
    %v231 = vsel %vm213, %v216, %v197
    %v232 = vsel %vm214, %v216, %v198
    %v233 = vand.u32 %v232, 4294901760
    %234 = vmatpush.msra.mxu0 %v233
    %v235 = vand.u32 %v231, 4294901760
    %236 = vmatpush.msra.mxu0 %v235
    %v237 = vand.u32 %v230, 4294901760
    %238 = vmatpush.msra.mxu0 %v237
    %v239 = vand.u32 %v229, 4294901760
    %240 = vmatpush.msra.mxu0 %v239
    %v241 = vand.u32 %v228, 4294901760
    %242 = vmatpush.msra.mxu0 %v241
    %v243 = vand.u32 %v227, 4294901760
    %244 = vmatpush.msra.mxu0 %v243
    %v245 = vand.u32 %v226, 4294901760
    %246 = vmatpush.msra.mxu0 %v245
    %v247 = vand.u32 %v225, 4294901760
    %248 = vmatpush.msra.mxu0 %v247
    %v249 = vand.u32 %v224, 4294901760
    %250 = vmatpush.msra.mxu0 %v249
    %v251 = vand.u32 %v223, 4294901760
    %252 = vmatpush.msra.mxu0 %v251
    %v253 = vand.u32 %v222, 4294901760
    %254 = vmatpush.msra.mxu0 %v253
    %v255 = vand.u32 %v221, 4294901760
    %256 = vmatpush.msra.mxu0 %v255
    %v257 = vand.u32 %v220, 4294901760
    %258 = vmatpush.msra.mxu0 %v257
    %v259 = vand.u32 %v219, 4294901760
    %260 = vmatpush.msra.mxu0 %v259
    %v261 = vand.u32 %v218, 4294901760
    %262 = vmatpush.msra.mxu0 %v261
    %v263 = vand.u32 %v217, 4294901760
    %264 = vmatpush.msra.mxu0 %v263
    %v265 = vand.u32 %v62, 4294901760
    %v266 = vsub.f32 %v62, %v265
    %v267 = vand.u32 %v266, 4294901760
    %v268 = vsub.f32 %v266, %v267
    %v269 = vand.u32 %v268, 4294901760
    %270 = vmatmul.f32.gmra.mxu0 %v269
    %v271 = vpop.f32.mrf.mxu0
    %v272 = vadd.f32 0.0, %v271
    %273 = vdwg.mxu0
    %v274 = vand.u32 %v232, 4294901760
    %v275 = vsub.f32 %v232, %v274
    %v276 = vand.u32 %v275, 4294901760
    %v277 = vsub.f32 %v275, %v276
    %v278 = vand.u32 %v277, 4294901760
    %279 = vmatpush.msra.mxu0 %v278
    %v280 = vand.u32 %v231, 4294901760
    %v281 = vsub.f32 %v231, %v280
    %v282 = vand.u32 %v281, 4294901760
    %v283 = vsub.f32 %v281, %v282
    %v284 = vand.u32 %v283, 4294901760
    %285 = vmatpush.msra.mxu0 %v284
    %v286 = vand.u32 %v230, 4294901760
    %v287 = vsub.f32 %v230, %v286
    %v288 = vand.u32 %v287, 4294901760
    %v289 = vsub.f32 %v287, %v288
    %v290 = vand.u32 %v289, 4294901760
    %291 = vmatpush.msra.mxu0 %v290
    %v292 = vand.u32 %v229, 4294901760
    %v293 = vsub.f32 %v229, %v292
    %v294 = vand.u32 %v293, 4294901760
    %v295 = vsub.f32 %v293, %v294
    %v296 = vand.u32 %v295, 4294901760
    %297 = vmatpush.msra.mxu0 %v296
    %v298 = vand.u32 %v228, 4294901760
    %v299 = vsub.f32 %v228, %v298
    %v300 = vand.u32 %v299, 4294901760
    %v301 = vsub.f32 %v299, %v300
    %v302 = vand.u32 %v301, 4294901760
    %303 = vmatpush.msra.mxu0 %v302
    %v304 = vand.u32 %v227, 4294901760
    %v305 = vsub.f32 %v227, %v304
    %v306 = vand.u32 %v305, 4294901760
    %v307 = vsub.f32 %v305, %v306
    %v308 = vand.u32 %v307, 4294901760
    %309 = vmatpush.msra.mxu0 %v308
    %v310 = vand.u32 %v226, 4294901760
    %v311 = vsub.f32 %v226, %v310
    %v312 = vand.u32 %v311, 4294901760
    %v313 = vsub.f32 %v311, %v312
    %v314 = vand.u32 %v313, 4294901760
    %315 = vmatpush.msra.mxu0 %v314
    %v316 = vand.u32 %v225, 4294901760
    %v317 = vsub.f32 %v225, %v316
    %v318 = vand.u32 %v317, 4294901760
    %v319 = vsub.f32 %v317, %v318
    %v320 = vand.u32 %v319, 4294901760
    %321 = vmatpush.msra.mxu0 %v320
    %v322 = vand.u32 %v224, 4294901760
    %v323 = vsub.f32 %v224, %v322
    %v324 = vand.u32 %v323, 4294901760
    %v325 = vsub.f32 %v323, %v324
    %v326 = vand.u32 %v325, 4294901760
    %327 = vmatpush.msra.mxu0 %v326
    %v328 = vand.u32 %v223, 4294901760
    %v329 = vsub.f32 %v223, %v328
    %v330 = vand.u32 %v329, 4294901760
    %v331 = vsub.f32 %v329, %v330
    %v332 = vand.u32 %v331, 4294901760
    %333 = vmatpush.msra.mxu0 %v332
    %v334 = vand.u32 %v222, 4294901760
    %v335 = vsub.f32 %v222, %v334
    %v336 = vand.u32 %v335, 4294901760
    %v337 = vsub.f32 %v335, %v336
    %v338 = vand.u32 %v337, 4294901760
    %339 = vmatpush.msra.mxu0 %v338
    %v340 = vand.u32 %v221, 4294901760
    %v341 = vsub.f32 %v221, %v340
    %v342 = vand.u32 %v341, 4294901760
    %v343 = vsub.f32 %v341, %v342
    %v344 = vand.u32 %v343, 4294901760
    %345 = vmatpush.msra.mxu0 %v344
    %v346 = vand.u32 %v220, 4294901760
    %v347 = vsub.f32 %v220, %v346
    %v348 = vand.u32 %v347, 4294901760
    %v349 = vsub.f32 %v347, %v348
    %v350 = vand.u32 %v349, 4294901760
    %351 = vmatpush.msra.mxu0 %v350
    %v352 = vand.u32 %v219, 4294901760
    %v353 = vsub.f32 %v219, %v352
    %v354 = vand.u32 %v353, 4294901760
    %v355 = vsub.f32 %v353, %v354
    %v356 = vand.u32 %v355, 4294901760
    %357 = vmatpush.msra.mxu0 %v356
    %v358 = vand.u32 %v218, 4294901760
    %v359 = vsub.f32 %v218, %v358
    %v360 = vand.u32 %v359, 4294901760
    %v361 = vsub.f32 %v359, %v360
    %v362 = vand.u32 %v361, 4294901760
    %363 = vmatpush.msra.mxu0 %v362
    %v364 = vand.u32 %v217, 4294901760
    %v365 = vsub.f32 %v217, %v364
    %v366 = vand.u32 %v365, 4294901760
    %v367 = vsub.f32 %v365, %v366
    %v368 = vand.u32 %v367, 4294901760
    %369 = vmatpush.msra.mxu0 %v368
    %v370 = vand.u32 %v62, 4294901760
    %371 = vmatmul.f32.gmra.mxu0 %v370
    %v372 = vpop.f32.mrf.mxu0
    %v373 = vadd.f32 %v272, %v372
    %374 = vdwg.mxu0
    %v375 = vand.u32 %v232, 4294901760
    %v376 = vsub.f32 %v232, %v375
    %377 = vmatpush.msra.mxu0 %v376
    %v378 = vand.u32 %v231, 4294901760
    %v379 = vsub.f32 %v231, %v378
    %380 = vmatpush.msra.mxu0 %v379
    %v381 = vand.u32 %v230, 4294901760
    %v382 = vsub.f32 %v230, %v381
    %383 = vmatpush.msra.mxu0 %v382
    %v384 = vand.u32 %v229, 4294901760
    %v385 = vsub.f32 %v229, %v384
    %386 = vmatpush.msra.mxu0 %v385
    %v387 = vand.u32 %v228, 4294901760
    %v388 = vsub.f32 %v228, %v387
    %389 = vmatpush.msra.mxu0 %v388
    %v390 = vand.u32 %v227, 4294901760
    %v391 = vsub.f32 %v227, %v390
    %392 = vmatpush.msra.mxu0 %v391
    %v393 = vand.u32 %v226, 4294901760
    %v394 = vsub.f32 %v226, %v393
    %395 = vmatpush.msra.mxu0 %v394
    %v396 = vand.u32 %v225, 4294901760
    %v397 = vsub.f32 %v225, %v396
    %398 = vmatpush.msra.mxu0 %v397
    %v399 = vand.u32 %v224, 4294901760
    %v400 = vsub.f32 %v224, %v399
    %401 = vmatpush.msra.mxu0 %v400
    %v402 = vand.u32 %v223, 4294901760
    %v403 = vsub.f32 %v223, %v402
    %404 = vmatpush.msra.mxu0 %v403
    %v405 = vand.u32 %v222, 4294901760
    %v406 = vsub.f32 %v222, %v405
    %407 = vmatpush.msra.mxu0 %v406
    %v408 = vand.u32 %v221, 4294901760
    %v409 = vsub.f32 %v221, %v408
    %410 = vmatpush.msra.mxu0 %v409
    %v411 = vand.u32 %v220, 4294901760
    %v412 = vsub.f32 %v220, %v411
    %413 = vmatpush.msra.mxu0 %v412
    %v414 = vand.u32 %v219, 4294901760
    %v415 = vsub.f32 %v219, %v414
    %416 = vmatpush.msra.mxu0 %v415
    %v417 = vand.u32 %v218, 4294901760
    %v418 = vsub.f32 %v218, %v417
    %419 = vmatpush.msra.mxu0 %v418
    %v420 = vand.u32 %v217, 4294901760
    %v421 = vsub.f32 %v217, %v420
    %422 = vmatpush.msra.mxu0 %v421
    %v423 = vand.u32 %v62, 4294901760
    %v424 = vsub.f32 %v62, %v423
    %425 = vmatmul.f32.gmra.mxu0 %v424
    %v426 = vpop.f32.mrf.mxu0
    %v427 = vadd.f32 %v373, %v426
    %428 = vdwg.mxu0
    %v429 = vand.u32 %v232, 4294901760
    %430 = vmatpush.msra.mxu0 %v429
    %v431 = vand.u32 %v231, 4294901760
    %432 = vmatpush.msra.mxu0 %v431
    %v433 = vand.u32 %v230, 4294901760
    %434 = vmatpush.msra.mxu0 %v433
    %v435 = vand.u32 %v229, 4294901760
    %436 = vmatpush.msra.mxu0 %v435
    %v437 = vand.u32 %v228, 4294901760
    %438 = vmatpush.msra.mxu0 %v437
    %v439 = vand.u32 %v227, 4294901760
    %440 = vmatpush.msra.mxu0 %v439
    %v441 = vand.u32 %v226, 4294901760
    %442 = vmatpush.msra.mxu0 %v441
    %v443 = vand.u32 %v225, 4294901760
    %444 = vmatpush.msra.mxu0 %v443
    %v445 = vand.u32 %v224, 4294901760
    %446 = vmatpush.msra.mxu0 %v445
    %v447 = vand.u32 %v223, 4294901760
    %448 = vmatpush.msra.mxu0 %v447
    %v449 = vand.u32 %v222, 4294901760
    %450 = vmatpush.msra.mxu0 %v449
    %v451 = vand.u32 %v221, 4294901760
    %452 = vmatpush.msra.mxu0 %v451
    %v453 = vand.u32 %v220, 4294901760
    %454 = vmatpush.msra.mxu0 %v453
    %v455 = vand.u32 %v219, 4294901760
    %456 = vmatpush.msra.mxu0 %v455
    %v457 = vand.u32 %v218, 4294901760
    %458 = vmatpush.msra.mxu0 %v457
    %v459 = vand.u32 %v217, 4294901760
    %460 = vmatpush.msra.mxu0 %v459
    %v461 = vand.u32 %v62, 4294901760
    %v462 = vsub.f32 %v62, %v461
    %v463 = vand.u32 %v462, 4294901760
    %464 = vmatmul.f32.gmra.mxu0 %v463
    %v465 = vpop.f32.mrf.mxu0
    %v466 = vadd.f32 %v427, %v465
    %467 = vdwg.mxu0
    %v468 = vand.u32 %v232, 4294901760
    %v469 = vsub.f32 %v232, %v468
    %v470 = vand.u32 %v469, 4294901760
    %471 = vmatpush.msra.mxu0 %v470
    %v472 = vand.u32 %v231, 4294901760
    %v473 = vsub.f32 %v231, %v472
    %v474 = vand.u32 %v473, 4294901760
    %475 = vmatpush.msra.mxu0 %v474
    %v476 = vand.u32 %v230, 4294901760
    %v477 = vsub.f32 %v230, %v476
    %v478 = vand.u32 %v477, 4294901760
    %479 = vmatpush.msra.mxu0 %v478
    %v480 = vand.u32 %v229, 4294901760
    %v481 = vsub.f32 %v229, %v480
    %v482 = vand.u32 %v481, 4294901760
    %483 = vmatpush.msra.mxu0 %v482
    %v484 = vand.u32 %v228, 4294901760
    %v485 = vsub.f32 %v228, %v484
    %v486 = vand.u32 %v485, 4294901760
    %487 = vmatpush.msra.mxu0 %v486
    %v488 = vand.u32 %v227, 4294901760
    %v489 = vsub.f32 %v227, %v488
    %v490 = vand.u32 %v489, 4294901760
    %491 = vmatpush.msra.mxu0 %v490
    %v492 = vand.u32 %v226, 4294901760
    %v493 = vsub.f32 %v226, %v492
    %v494 = vand.u32 %v493, 4294901760
    %495 = vmatpush.msra.mxu0 %v494
    %v496 = vand.u32 %v225, 4294901760
    %v497 = vsub.f32 %v225, %v496
    %v498 = vand.u32 %v497, 4294901760
    %499 = vmatpush.msra.mxu0 %v498
    %v500 = vand.u32 %v224, 4294901760
    %v501 = vsub.f32 %v224, %v500
    %v502 = vand.u32 %v501, 4294901760
    %503 = vmatpush.msra.mxu0 %v502
    %v504 = vand.u32 %v223, 4294901760
    %v505 = vsub.f32 %v223, %v504
    %v506 = vand.u32 %v505, 4294901760
    %507 = vmatpush.msra.mxu0 %v506
    %v508 = vand.u32 %v222, 4294901760
    %v509 = vsub.f32 %v222, %v508
    %v510 = vand.u32 %v509, 4294901760
    %511 = vmatpush.msra.mxu0 %v510
    %v512 = vand.u32 %v221, 4294901760
    %v513 = vsub.f32 %v221, %v512
    %v514 = vand.u32 %v513, 4294901760
    %515 = vmatpush.msra.mxu0 %v514
    %v516 = vand.u32 %v220, 4294901760
    %v517 = vsub.f32 %v220, %v516
    %v518 = vand.u32 %v517, 4294901760
    %519 = vmatpush.msra.mxu0 %v518
    %v520 = vand.u32 %v219, 4294901760
    %v521 = vsub.f32 %v219, %v520
    %v522 = vand.u32 %v521, 4294901760
    %523 = vmatpush.msra.mxu0 %v522
    %v524 = vand.u32 %v218, 4294901760
    %v525 = vsub.f32 %v218, %v524
    %v526 = vand.u32 %v525, 4294901760
    %527 = vmatpush.msra.mxu0 %v526
    %v528 = vand.u32 %v217, 4294901760
    %v529 = vsub.f32 %v217, %v528
    %v530 = vand.u32 %v529, 4294901760
    %531 = vmatpush.msra.mxu0 %v530
    %v532 = vand.u32 %v62, 4294901760
    %533 = vmatmul.f32.gmra.mxu0 %v532
    %v534 = vpop.f32.mrf.mxu0
    %v535 = vadd.f32 %v466, %v534
    %536 = vdwg.mxu0
    %v537 = vand.u32 %v232, 4294901760
    %538 = vmatpush.msra.mxu0 %v537
    %v539 = vand.u32 %v231, 4294901760
    %540 = vmatpush.msra.mxu0 %v539
    %v541 = vand.u32 %v230, 4294901760
    %542 = vmatpush.msra.mxu0 %v541
    %v543 = vand.u32 %v229, 4294901760
    %544 = vmatpush.msra.mxu0 %v543
    %v545 = vand.u32 %v228, 4294901760
    %546 = vmatpush.msra.mxu0 %v545
    %v547 = vand.u32 %v227, 4294901760
    %548 = vmatpush.msra.mxu0 %v547
    %v549 = vand.u32 %v226, 4294901760
    %550 = vmatpush.msra.mxu0 %v549
    %v551 = vand.u32 %v225, 4294901760
    %552 = vmatpush.msra.mxu0 %v551
    %v553 = vand.u32 %v224, 4294901760
    %554 = vmatpush.msra.mxu0 %v553
    %v555 = vand.u32 %v223, 4294901760
    %556 = vmatpush.msra.mxu0 %v555
    %v557 = vand.u32 %v222, 4294901760
    %558 = vmatpush.msra.mxu0 %v557
    %v559 = vand.u32 %v221, 4294901760
    %560 = vmatpush.msra.mxu0 %v559
    %v561 = vand.u32 %v220, 4294901760
    %562 = vmatpush.msra.mxu0 %v561
    %v563 = vand.u32 %v219, 4294901760
    %564 = vmatpush.msra.mxu0 %v563
    %v565 = vand.u32 %v218, 4294901760
    %566 = vmatpush.msra.mxu0 %v565
    %v567 = vand.u32 %v217, 4294901760
    %568 = vmatpush.msra.mxu0 %v567
    %v569 = vand.u32 %v62, 4294901760
    %570 = vmatmul.f32.gmra.mxu0 %v569
    %v571 = vpop.f32.mrf.mxu0
    %v572 = vadd.f32 %v535, %v571
    %573 = vdwg.mxu0
    %v574 = vmax.f32 %v572, 0.0
    %v575 = vperm.slane %v574, 0
    %v576 = vmul.f32 %v41, %v575
    %v577 = vmul.f32 %v42, %v575
    %v578 = vmul.f32 %v43, %v575
    %v579 = vmul.f32 %v44, %v575
    %v580 = vmul.f32 %v45, %v575
    %v581 = vmul.f32 %v46, %v575
    %v582 = vmul.f32 %v47, %v575
    %v583 = vmul.f32 %v48, %v575
    %584 = vst [vmem:[#allocation7] sm:$0xff] %v576
    %585 = vst [vmem:[#allocation7 + $0x8] sm:$0xff] %v577
    %586 = vst [vmem:[#allocation7 + $0x10] sm:$0xff] %v578
    %587 = vst [vmem:[#allocation7 + $0x18] sm:$0xff] %v579
    %588 = vst [vmem:[#allocation7 + $0x20] sm:$0xff] %v580
    %589 = vst [vmem:[#allocation7 + $0x28] sm:$0xff] %v581
    %590 = vst [vmem:[#allocation7 + $0x30] sm:$0xff] %v582
    %591 = vst [vmem:[#allocation7 + $0x38] sm:$0xff] %v583
    // Predicated region
    $region18: #{tpu_custom_call.1} parent=1 // pred_check
      _
    $region19: #{tpu_custom_call.1} parent=1 // pred_check_branch
      %593 = sbr.rel (0) target = $region21
    $region20: #{tpu_custom_call.1} parent=1 // pred_region
      %595 = vsyncadd [#allocation4], 0
      %s596 = sshll.u32 [#allocation7], 4
      %s597 = int_to_ptr.vmem [resolvable:$true] %s596
      %s598 = sshll.u32 %s2, 4
      %s599 = int_to_ptr.hbm [resolvable:$true] %s598
      %604 = dma.vmem_to_hbm [thread:$0]  %s597, 1024, %s599, [#allocation4], 128, 128, 8
    $region21: #{tpu_custom_call.1} parent=1 // pred_fallthru
      _
    // Predicated region
    $region22: #{tpu_custom_call.1} parent=1 // pred_check
      _
    $region23: #{tpu_custom_call.1} parent=1 // pred_check_branch
      %606 = sbr.rel (0) target = $region25
    $region24: #{tpu_custom_call.1} parent=1 // pred_region
      %608 = dma.done [#allocation4], 1024
    $region25: #{tpu_custom_call.1} parent=1 // pred_fallthru
      _
    %609 = vsyncpa [#allocation3], 1
    %610 = vsyncpa [#allocation4], 1
    %611 = vsyncpa [#allocation5], 1

</llo_original>
